<compile_context>
chip_gen: v7x
topology: tpu7x:2x2x1
jax: 0.10.0
libtpu: 0.0.40
codegen_flags: <defaults>
</compile_context>

<pallas_src>
import jax
import jax.numpy as jnp
from jax.experimental import pallas as pl
from jax.experimental.pallas import tpu as pltpu


def _mish_kernel(x_ref, o_ref):
    x = x_ref[...].astype(jnp.float32)

    # mish(x) = x * tanh(softplus(x)) = x * e*(e+2) / (e*(e+2) + 2),  e = exp(x)
    # Clamp the exp argument at 20: above that the ratio rounds to exactly 1.0f
    # (so y == x, matching tanh(softplus(x)) -> 1) and e*(e+2) cannot overflow.
    # For x < ~-87 the f32 exp underflows to 0 and y -> 0, within f32 tolerance
    # of the tiny negative true value.
    e = jnp.exp(jnp.minimum(x, 20.0))
    num = e * (e + 2.0)
    den = num + 2.0

    # EUP approximate reciprocal + one Newton-Raphson refinement: full f32
    # accuracy while keeping the divide off the VALU critical path.
    # (v7x note: if a bundle dump ever shows the EUP slot binding, swap this
    # seed for a VALU-only bitcast-exponent trick; exp stays the lone EUP op.)
    r = pl.reciprocal(den, approx=True)
    r = r * (2.0 - den * r)

    # Multiply (num * r) first so a huge |x| never overflows an intermediate.
    o_ref[...] = (x * (num * r)).astype(o_ref.dtype)


def _tpu_generation() -> int:
    try:
        kind = jax.devices()[0].device_kind.lower()
    except Exception:
        return 0
    if "v7" in kind or "tpu7" in kind:
        return 7
    if "v6" in kind:
        return 6
    if "v5" in kind:
        return 5
    if "v4" in kind:
        return 4
    return 0


def _tuning_for(gen: int):
    """(target_block_bytes, vmem_limit_bytes, want_multi_step_grid)."""
    if gen >= 7:
        # 64 MiB physical VMEM, ~3.2 TB/s HBM, 2 TensorCores per chip:
        # 8 MiB blocks amortize the ~0.35us/step overhead; 48 MiB limit leaves
        # headroom for compiler scratch / f32 temporaries (do NOT use 64).
        return 8 << 20, 48 << 20, True
    if gen == 6:
        # 128 MiB physical VMEM, ~1.4 TB/s: plenty of headroom, small free win.
        return 8 << 20, 64 << 20, False
    # v5e and older / unknown: 4 MiB blocks are already ~roofline; the 16 MiB
    # scoped default cannot hold double-buffered 4 MiB in+out blocks -> 32 MiB.
    return 4 << 20, 32 << 20, False


def mish(x: jax.Array) -> jax.Array:
    """Apply Mish elementwise to an array of any shape (e.g. NCHW)."""
    orig_shape = x.shape
    orig_dtype = x.dtype
    n = x.size
    itemsize = jnp.dtype(orig_dtype).itemsize

    target_block_bytes, vmem_limit, multi_step = _tuning_for(_tpu_generation())

    # Widest lane-dense slab width (multiple of 128, up to 1024) dividing n.
    lane_w = 128
    for cand in (1024, 512, 256, 128):
        if n % cand == 0:
            lane_w = cand
            break

    pad = (-n) % lane_w
    if pad:
        # TODO(synk): unaligned sizes still pay a pad + slice copy (~3x HBM
        # traffic); a masked-tail / manual-DMA path would restore 1x. Aligned
        # shapes (the common conv-activation case) take the zero-copy branch.
        x_flat = jnp.pad(x.reshape(-1), (0, pad))
    else:
        x_flat = x.reshape(-1)
    rows = x_flat.size // lane_w
    x2d = x_flat.reshape(rows, lane_w)

    # Block rows sized by the real element size (bf16 gets the same byte budget
    # as f32), rounded to the dtype's sublane packing (8 f32 / 16 bf16 / 32 i8).
    sub_mult = max(8, 32 // max(1, itemsize))
    tr = target_block_bytes // (lane_w * itemsize)
    tr = max(sub_mult, (tr // sub_mult) * sub_mult)
    if tr >= rows:
        if multi_step and rows >= 2 * sub_mult:
            # 2 TensorCores per chip: guarantee >= 2 grid steps so the
            # ("parallel",) axis shards the stream across both cores.
            tr = max(sub_mult, (((rows + 1) // 2) // sub_mult) * sub_mult)
        else:
            tr = rows  # full-extent block dim (exempt from the 8-row rule)

    grid = (pl.cdiv(rows, tr),)  # ragged last block is masked by Pallas

    cost = pl.CostEstimate(
        flops=8 * n,
        transcendentals=2 * n,
        bytes_accessed=2 * n * itemsize,
    )

    out2d = pl.pallas_call(
        _mish_kernel,
        out_shape=jax.ShapeDtypeStruct((rows, lane_w), orig_dtype),
        grid=grid,
        in_specs=[pl.BlockSpec((tr, lane_w), lambda i: (i, 0))],
        out_specs=pl.BlockSpec((tr, lane_w), lambda i: (i, 0)),
        compiler_params=pltpu.CompilerParams(
            dimension_semantics=("parallel",),
            vmem_limit_bytes=vmem_limit,
        ),
        cost_estimate=cost,
    )(x2d)

    out = out2d.reshape(-1)
    if pad:
        out = out[:n]
    return out.reshape(orig_shape)


def mish_ref(x):
    # Numerically stable reference: softplus(x) = max(x,0) + log1p(exp(-|x|))
    sp = jnp.maximum(x, 0.0) + jnp.log1p(jnp.exp(-jnp.abs(x)))
    return x * jnp.tanh(sp)


if __name__ == "__main__":
    key = jax.random.PRNGKey(0)
    # Small NCHW input consistent with a conv-net activation: batch=2, C=4, 16x16
    x = jax.random.normal(key, (2, 4, 16, 16), dtype=jnp.float32)

    y = jax.block_until_ready(mish(x))

    y_ref = mish_ref(x)
    assert y.shape == x.shape and y.dtype == x.dtype
    assert jnp.allclose(y, y_ref, atol=1e-5, rtol=1e-4)
    assert bool(jnp.all(jnp.isfinite(y)))
    print("KERNEL_OK")
</pallas_src>

<mosaic_0001>
module attributes {stable_mosaic.version = 11 : i64} {
  func.func @_mish_kernel(%arg0: i32, %arg1: memref<2x1024xf32, #tpu.memory_space<vmem>>, %arg2: memref<2x1024xf32, #tpu.memory_space<vmem>>) attributes {dimension_semantics = [#tpu.dimension_semantics<parallel>], iteration_bounds = array<i64: 1>, scalar_prefetch = 0 : i64, scratch_operands = 0 : i64, tpu.core_type = #tpu.core_type<tc>, window_params = [{transform_indices = @transform_0, window_bounds = array<i64: 2, 1024>}, {transform_indices = @transform_1, window_bounds = array<i64: 2, 1024>}]} {
    %c0 = arith.constant 0 : index
    %c0_0 = arith.constant 0 : index
    %0 = vector.load %arg1[%c0, %c0_0] : memref<2x1024xf32, #tpu.memory_space<vmem>>, vector<2x1024xf32>
    %cst = arith.constant 2.000000e+01 : f32
    %1 = vector.broadcast %cst : f32 to vector<2x1024xf32>
    %2 = arith.minimumf %0, %1 : vector<2x1024xf32>
    %3 = math.exp %2 : vector<2x1024xf32>
    %cst_1 = arith.constant 2.000000e+00 : f32
    %4 = vector.broadcast %cst_1 : f32 to vector<2x1024xf32>
    %5 = arith.addf %3, %4 : vector<2x1024xf32>
    %6 = arith.mulf %3, %5 : vector<2x1024xf32>
    %cst_2 = arith.constant 2.000000e+00 : f32
    %7 = vector.broadcast %cst_2 : f32 to vector<2x1024xf32>
    %8 = arith.addf %6, %7 : vector<2x1024xf32>
    %9 = tpu.reciprocal %8 {approx = true} : vector<2x1024xf32> -> vector<2x1024xf32>
    %10 = arith.mulf %8, %9 : vector<2x1024xf32>
    %cst_3 = arith.constant 2.000000e+00 : f32
    %11 = vector.broadcast %cst_3 : f32 to vector<2x1024xf32>
    %12 = arith.subf %11, %10 : vector<2x1024xf32>
    %13 = arith.mulf %9, %12 : vector<2x1024xf32>
    %14 = arith.mulf %6, %13 : vector<2x1024xf32>
    %15 = arith.mulf %0, %14 : vector<2x1024xf32>
    %c0_4 = arith.constant 0 : index
    %c0_5 = arith.constant 0 : index
    %16 = vector.load %arg2[%c0_4, %c0_5] : memref<2x1024xf32, #tpu.memory_space<vmem>>, vector<2x1024xf32>
    tpu.vector_store %arg2[%c0_4, %c0_5], %15 {strides = array<i32>} : memref<2x1024xf32, #tpu.memory_space<vmem>>, vector<2x1024xf32>,
    return
  }
  func.func @transform_0(%arg0: i32) -> (i32, i32) {
    %c0_i32 = arith.constant 0 : i32
    %c0_i32_0 = arith.constant 0 : i32
    return %arg0, %c0_i32 : i32, i32
  }
  func.func @transform_1(%arg0: i32) -> (i32, i32) {
    %c0_i32 = arith.constant 0 : i32
    %c0_i32_0 = arith.constant 0 : i32
    return %arg0, %c0_i32 : i32, i32
  }
}

</mosaic_0001>

<llo_original>
// kernel: tpu_custom_call.1
$region0: #{tpu_custom_call.1}
  #allocation0 [shape = 'u32[]', space=smem, size = 0x4, offset = 0x4, fixed_abs, tag = 'smem constant byte address 0x4 - core index']
  #allocation1 [shape = 'u32[144,128]{1,0:T(1,128)}', space=vmem, size = 0x12000, scoped, tag = 'internal scratch']
  %s0 = inlined_call_operand.hbm [shape: f32[2,1024], index: 0, kind: input, shape index: {}]
  %s1 = inlined_call_operand.hbm [shape: f32[2,1024], index: 1, kind: output, shape index: {}]
  %s2 = sld [smem:[#allocation0]]
  $region18: #{tpu_custom_call.1} parent=0
    _
  %s4 = ssub.s32 1, %s2
  %s5 = scalar_select 0, %s4, %s2
  $region1: #{tpu_custom_call.1} parent=0
    #allocation2 [shape = 'u8[8192]{0}', space=vmem, size = 0x2000, scoped, tag = 'input window, operand 0, single buffered']
    #allocation3 [shape = 's32[1]{0}', space=sflag, size = 0x4, scoped, tag = 'scoped memory for tpu_custom_call.1']
    #allocation4 [shape = 's32[1]{0}', space=sflag, size = 0x4, scoped, tag = 'scoped memory for tpu_custom_call.1']
    #allocation5 [shape = 'u8[8192]{0}', space=vmem, size = 0x2000, scoped, tag = 'output window, operand 0, single buffered']
    %6 = vsyncpa [#allocation3], 0
    %7 = vsyncpa [#allocation4], 0
    // Predicated region
    $region2: #{tpu_custom_call.1} parent=1 // pred_check
      _
    $region3: #{tpu_custom_call.1} parent=1 // pred_check_branch
      %9 = sbr.rel (0) target = $region5
    $region4: #{tpu_custom_call.1} parent=1 // pred_region
      %s11 = ssub.s32 256, 256
      %12 = vsyncadd [#allocation3], %s11
      %s14 = sshll.u32 [#allocation2], 4
      %s15 = int_to_ptr.vmem [resolvable:$true] %s14
      %17 = dma.hbm_to_vmem [thread:$0]  %s0, 256, %s15, [#allocation3]
    $region5: #{tpu_custom_call.1} parent=1 // pred_fallthru
      _
    // Predicated region
    $region6: #{tpu_custom_call.1} parent=1 // pred_check
      _
    $region7: #{tpu_custom_call.1} parent=1 // pred_check_branch
      %19 = sbr.rel (0) target = $region9
    $region8: #{tpu_custom_call.1} parent=1 // pred_region
      %20 = dma.done [#allocation3], 256
    $region9: #{tpu_custom_call.1} parent=1 // pred_fallthru
      _
    %v21 = vld [vmem:[#allocation2] sm:$0xff]
    %v22 = vld [vmem:[#allocation2 + $0x8] sm:$0xff]
    %v23 = vmin.f32 %v21, 20.0
    %v24 = vmin.f32 %v22, 20.0
    %v25 = vmul.f32 %v23, 1.442695
    %v26 = vpow.pop %v25
    %v27 = vmul.f32 %v24, 1.442695
    %v28 = vpow.pop %v27
    %v29 = vadd.f32 %v26, 2.0
    %v30 = vadd.f32 %v28, 2.0
    %v31 = vmul.f32 %v26, %v29
    %v32 = vmul.f32 %v28, %v30
    %v33 = vadd.f32 %v31, 2.0
    %v34 = vadd.f32 %v32, 2.0
    %v35 = vrcp.pop %v33
    %v36 = vrcp.pop %v34
    %v37 = vmul.f32 %v33, %v35
    %v38 = vmul.f32 %v34, %v36
    %v39 = vsub.f32 2.0, %v37
    %v40 = vsub.f32 2.0, %v38
    %v41 = vmul.f32 %v35, %v39
    %v42 = vmul.f32 %v36, %v40
    %v43 = vmul.f32 %v31, %v41
    %v44 = vmul.f32 %v32, %v42
    %v45 = vmul.f32 %v21, %v43
    %v46 = vmul.f32 %v22, %v44
    %47 = vst [vmem:[#allocation5] sm:$0xff] %v45
    %48 = vst [vmem:[#allocation5 + $0x8] sm:$0xff] %v46
    // Predicated region
    $region10: #{tpu_custom_call.1} parent=1 // pred_check
      _
    $region11: #{tpu_custom_call.1} parent=1 // pred_check_branch
      %50 = sbr.rel (0) target = $region13
    $region12: #{tpu_custom_call.1} parent=1 // pred_region
      %s52 = ssub.s32 256, 256
      %53 = vsyncadd [#allocation4], %s52
      %s55 = sshll.u32 [#allocation5], 4
      %s56 = int_to_ptr.vmem [resolvable:$true] %s55
      %58 = dma.vmem_to_hbm [thread:$0]  %s56, 256, %s1, [#allocation4]
    $region13: #{tpu_custom_call.1} parent=1 // pred_fallthru
      _
    // Predicated region
    $region14: #{tpu_custom_call.1} parent=1 // pred_check
      _
    $region15: #{tpu_custom_call.1} parent=1 // pred_check_branch
      %60 = sbr.rel (0) target = $region17
    $region16: #{tpu_custom_call.1} parent=1 // pred_region
      %61 = dma.done [#allocation4], 256
    $region17: #{tpu_custom_call.1} parent=1 // pred_fallthru
      _
    %62 = vsyncpa [#allocation3], 1
    %63 = vsyncpa [#allocation4], 1

</llo_original>
